<compile_context>
chip_gen: v7x
topology: tpu7x:2x2x1
jax: 0.10.0
libtpu: 0.0.40
codegen_flags: <defaults>
</compile_context>

<pallas_src>
import functools

import jax
import jax.numpy as jnp
from jax.experimental import pallas as pl
from jax.experimental.pallas import tpu as pltpu


def _plat_kernel(xpf_ref, t_ref, brow_ref, ds_ref, di_ref, orow_ref, out_ref):
    # xpf_ref : (Bt, H+2, (W+2)*C)   lane-dense padded input slab
    # t_ref   : (3, (W+2)*C, 3*W*C)  per-dy block-Toeplitz conv weights [w1|w2|wi]
    # brow_ref: (1, 3*W*C)           tiled conv biases [b1|b2|bi]
    # ds_ref  : (W*C, W*OUT)         kron(I_W, wo[:C])  (sout branch of out_conv)
    # di_ref  : (W*C, W*OUT)         kron(I_W, wo[C:])  (input_layer branch)
    # orow_ref: (1, W*OUT)           tiled out_conv bias
    # out_ref : (Bt, H, W*OUT)
    Bt, H, wout = out_ref.shape
    win = xpf_ref.shape[2]
    ncat = t_ref.shape[2]
    wc = ncat // 3                      # = W * C
    rows = Bt * H

    x = xpf_ref[...].astype(jnp.float32)             # (Bt, H+2, (W+2)*C)

    # --- fused 3x3 convs: one matmul per dy tap (dx taps live inside T) ------
    acc = brow_ref[...].astype(jnp.float32)          # (1, 3*W*C), broadcasts
    for dy in range(3):                               # short, fully unrolled
        slab = x[:, dy:dy + H, :].reshape(rows, win)             # (Bt*H, (W+2)*C)
        acc = acc + jnp.dot(slab, t_ref[dy].astype(jnp.float32),
                            preferred_element_type=jnp.float32)  # (Bt*H, 3*W*C)

    a1 = acc[:, :wc]                     # layer1(cen)      (Bt*H, W*C)
    a2 = acc[:, wc:2 * wc]               # layer2(cen)      (Bt*H, W*C)
    ai = acc[:, 2 * wc:]                 # input_layer(cen) (Bt*H, W*C)

    # --- delta_conv product + fused 1x1 out_conv (two aligned matmuls, no
    # lane concat) -------------------------------------------------------------
    o = jnp.dot(a1 * a2, ds_ref[...].astype(jnp.float32),
                preferred_element_type=jnp.float32)              # (Bt*H, W*OUT)
    o = o + jnp.dot(ai, di_ref[...].astype(jnp.float32),
                    preferred_element_type=jnp.float32)
    o = o + orow_ref[...].astype(jnp.float32)

    # lane-dense store (W*OUT wide -> unmasked full-lane vst)
    out_ref[...] = o.reshape(Bt, H, wout).astype(out_ref.dtype)


def _conv_toeplitz(wk, W):
    """wk: (3,3,C,Co) HWIO conv weight -> (3, (W+2)*C, W*Co) block-Toeplitz.

    For a padded input row-slab r of shape ((W+2)*C,), (r @ T[dy]) gives the
    dy-tap contribution of the 3x3 'same' conv, laid out lane-dense as
    (..., W*Co).  Pure re-arrangement of raw weights (no arithmetic)."""
    kh, kw, C, Co = wk.shape
    eye_w = jnp.eye(W, dtype=wk.dtype)
    rows = []
    for dy in range(kh):
        t = jnp.zeros(((W + 2) * C, W * Co), wk.dtype)
        for dx in range(kw):
            blk = jnp.kron(eye_w, wk[dy, dx])                    # (W*C, W*Co)
            t = t + jnp.pad(blk, ((dx * C, (kw - 1 - dx) * C), (0, 0)))
        rows.append(t)
    return jnp.stack(rows, axis=0)


@functools.partial(jax.jit, static_argnames=("out_ch", "batch_tile"))
def plat_contrast_forward(x, params, out_ch, batch_tile=None):
    """x: (B, H, W, C) NHWC.  params: (w1,b1,w2,b2,wi,bi,wo,bo) with
    3x3 weights in HWIO (3,3,C,C) and out_conv weight (2C, out_ch)."""
    w1, b1, w2, b2, wi, bi, wo, bo = params
    B, H, W, C = x.shape
    OUT = out_ch
    win = (W + 2) * C

    # ---- wrapper-side weight re-layout (exact, fused by jit) ----------------
    t_all = jnp.concatenate(
        [_conv_toeplitz(w1, W), _conv_toeplitz(w2, W), _conv_toeplitz(wi, W)],
        axis=-1)                                         # (3, (W+2)*C, 3*W*C)
    brow = jnp.concatenate(
        [jnp.tile(b1, W), jnp.tile(b2, W), jnp.tile(bi, W)]).reshape(1, 3 * W * C)
    eye_w = jnp.eye(W, dtype=wo.dtype)
    d_s = jnp.kron(eye_w, wo[:C, :])                     # (W*C, W*OUT) sout branch
    d_i = jnp.kron(eye_w, wo[C:, :])                     # (W*C, W*OUT) input branch
    orow = jnp.tile(bo, W).reshape(1, W * OUT)
    # NOTE: for v6e/v7x a bf16 MXU path would cast t_all/d_s/d_i and the input
    # slab to bf16 here (keeping f32 accumulation); kept f32 for exactness.

    # lane-dense padded input: (B, H+2, (W+2)*C)
    xpf = jnp.pad(x, ((0, 0), (1, 1), (1, 1), (0, 0))).reshape(B, H + 2, win)

    # batch tile: amortize per-grid-step overhead, but keep >= 2 grid steps so
    # both v7x TensorCores get work when B allows it.
    if batch_tile is None:
        batch_tile = 1
        for cand in (8, 4, 2):
            if B % cand == 0 and B // cand >= 2:
                batch_tile = cand
                break
    Bt = batch_tile
    assert B % Bt == 0, "batch must be divisible by batch_tile"
    grid = (B // Bt,)

    flops = (2 * B * H * win * (3 * W * C)              # fused 3x3 convs
             + 2 * 2 * B * H * (W * C) * (W * OUT)      # fused 1x1 out_conv (2 branches)
             + 6 * B * H * W * (3 * C + OUT))           # bias adds + product
    bytes_accessed = (xpf.size * xpf.dtype.itemsize
                      + (t_all.size + brow.size + d_s.size + d_i.size + orow.size) * 4
                      + B * H * W * OUT * x.dtype.itemsize)

    out_flat = pl.pallas_call(
        _plat_kernel,
        out_shape=jax.ShapeDtypeStruct((B, H, W * OUT), x.dtype),
        grid=grid,
        in_specs=[
            pl.BlockSpec((Bt, H + 2, win), lambda g: (g, 0, 0)),
            pl.BlockSpec(t_all.shape, lambda g: (0, 0, 0)),
            pl.BlockSpec(brow.shape, lambda g: (0, 0)),
            pl.BlockSpec(d_s.shape, lambda g: (0, 0)),
            pl.BlockSpec(d_i.shape, lambda g: (0, 0)),
            pl.BlockSpec(orow.shape, lambda g: (0, 0)),
        ],
        out_specs=pl.BlockSpec((Bt, H, W * OUT), lambda g: (g, 0, 0)),
        compiler_params=pltpu.CompilerParams(
            dimension_semantics=("parallel",),
            vmem_limit_bytes=32 * 1024 * 1024),
        cost_estimate=pl.CostEstimate(flops=int(flops), transcendentals=0,
                                      bytes_accessed=int(bytes_accessed)),
    )(xpf, t_all, brow, d_s, d_i, orow)

    # free layout plumbing back to NHWC
    return out_flat.reshape(B, H, W, OUT)


def _ref_forward(x, params):
    """Pure-JAX reference (same math as the PyTorch module, in NHWC)."""
    w1, b1, w2, b2, wi, bi, wo, bo = params

    def conv3(x, w, b):
        y = jax.lax.conv_general_dilated(
            x, w, window_strides=(1, 1), padding="SAME",
            dimension_numbers=("NHWC", "HWIO", "NHWC"))
        return y + b

    a1 = conv3(x, w1, b1)
    a2 = conv3(x, w2, b2)
    ai = conv3(x, wi, bi)
    cat = jnp.concatenate([a1 * a2, ai], axis=-1)
    return jnp.einsum("bhwc,co->bhwo", cat, wo) + bo


if __name__ == "__main__":
    B, C, H, W = 2, 4, 16, 16
    OUT = 8

    key = jax.random.PRNGKey(0)
    ks = jax.random.split(key, 9)

    # Deterministic synthetic parameters (shapes match the PyTorch module).
    w1 = 0.1 * jax.random.normal(ks[0], (3, 3, C, C), jnp.float32)
    b1 = 0.1 * jax.random.normal(ks[1], (C,), jnp.float32)
    w2 = 0.1 * jax.random.normal(ks[2], (3, 3, C, C), jnp.float32)
    b2 = 0.1 * jax.random.normal(ks[3], (C,), jnp.float32)
    wi = 0.1 * jax.random.normal(ks[4], (3, 3, C, C), jnp.float32)
    bi = 0.1 * jax.random.normal(ks[5], (C,), jnp.float32)
    wo = 0.1 * jax.random.normal(ks[6], (2 * C, OUT), jnp.float32)
    bo = 0.1 * jax.random.normal(ks[7], (OUT,), jnp.float32)
    params = (w1, b1, w2, b2, wi, bi, wo, bo)

    x = jax.random.normal(ks[8], (B, H, W, C), jnp.float32)

    out = plat_contrast_forward(x, params, OUT)
    out = jax.block_until_ready(out)

    ref = jax.block_until_ready(_ref_forward(x, params))
    assert out.shape == (B, H, W, OUT)
    assert jnp.allclose(out, ref, atol=1e-4, rtol=1e-4), "mismatch vs reference"

    print("KERNEL_OK")
</pallas_src>

<mosaic_0001>
module attributes {stable_mosaic.version = 11 : i64} {
  func.func @_plat_kernel(%arg0: i32, %arg1: memref<1x18x72xf32, #tpu.memory_space<vmem>>, %arg2: memref<3x72x192xf32, #tpu.memory_space<vmem>>, %arg3: memref<1x192xf32, #tpu.memory_space<vmem>>, %arg4: memref<64x128xf32, #tpu.memory_space<vmem>>, %arg5: memref<64x128xf32, #tpu.memory_space<vmem>>, %arg6: memref<1x128xf32, #tpu.memory_space<vmem>>, %arg7: memref<1x16x128xf32, #tpu.memory_space<vmem>>) attributes {dimension_semantics = [#tpu.dimension_semantics<parallel>], iteration_bounds = array<i64: 2>, scalar_prefetch = 0 : i64, scratch_operands = 0 : i64, tpu.core_type = #tpu.core_type<tc>, window_params = [{transform_indices = @transform_0, window_bounds = array<i64: 1, 18, 72>}, {pipeline_mode = #tpu.pipeline_mode<synchronous>, transform_indices = @transform_1, window_bounds = array<i64: 3, 72, 192>}, {pipeline_mode = #tpu.pipeline_mode<synchronous>, transform_indices = @transform_2, window_bounds = array<i64: 1, 192>}, {pipeline_mode = #tpu.pipeline_mode<synchronous>, transform_indices = @transform_3, window_bounds = array<i64: 64, 128>}, {pipeline_mode = #tpu.pipeline_mode<synchronous>, transform_indices = @transform_4, window_bounds = array<i64: 64, 128>}, {pipeline_mode = #tpu.pipeline_mode<synchronous>, transform_indices = @transform_5, window_bounds = array<i64: 1, 128>}, {transform_indices = @transform_6, window_bounds = array<i64: 1, 16, 128>}]} {
    %c0 = arith.constant 0 : index
    %c0_0 = arith.constant 0 : index
    %c0_1 = arith.constant 0 : index
    %0 = vector.load %arg1[%c0, %c0_0, %c0_1] : memref<1x18x72xf32, #tpu.memory_space<vmem>>, vector<1x18x72xf32>
    %c0_2 = arith.constant 0 : index
    %c0_3 = arith.constant 0 : index
    %1 = vector.load %arg3[%c0_2, %c0_3] : memref<1x192xf32, #tpu.memory_space<vmem>>, vector<1x192xf32>
    %2 = vector.extract_strided_slice %0 {offsets = [0, 0, 0], sizes = [1, 16, 72], strides = [1, 1, 1]} : vector<1x18x72xf32> to vector<1x16x72xf32>
    %3 = vector.shape_cast %2 : vector<1x16x72xf32> to vector<16x72xf32>
    %c0_4 = arith.constant 0 : index
    %c0_5 = arith.constant 0 : index
    %c0_6 = arith.constant 0 : index
    %4 = vector.load %arg2[%c0_4, %c0_5, %c0_6] : memref<3x72x192xf32, #tpu.memory_space<vmem>>, vector<1x72x192xf32>
    %5 = vector.shape_cast %4 : vector<1x72x192xf32> to vector<72x192xf32>
    %cst = arith.constant dense<0.000000e+00> : vector<16x192xf32>
    %6 = tpu.matmul %3, %5, %cst {dimension_numbers = #tpu.dot_dimension_numbers<[1], [0], [0], [1], [0, 0, 1, 1], [], []>} : vector<16x72xf32>, vector<72x192xf32>, vector<16x192xf32> -> vector<16x192xf32>
    %7 = vector.broadcast %1 : vector<1x192xf32> to vector<16x192xf32>
    %8 = arith.addf %7, %6 : vector<16x192xf32>
    %9 = vector.extract_strided_slice %0 {offsets = [0, 1, 0], sizes = [1, 16, 72], strides = [1, 1, 1]} : vector<1x18x72xf32> to vector<1x16x72xf32>
    %10 = vector.shape_cast %9 : vector<1x16x72xf32> to vector<16x72xf32>
    %c1 = arith.constant 1 : index
    %c0_7 = arith.constant 0 : index
    %c0_8 = arith.constant 0 : index
    %11 = vector.load %arg2[%c1, %c0_7, %c0_8] : memref<3x72x192xf32, #tpu.memory_space<vmem>>, vector<1x72x192xf32>
    %12 = vector.shape_cast %11 : vector<1x72x192xf32> to vector<72x192xf32>
    %cst_9 = arith.constant dense<0.000000e+00> : vector<16x192xf32>
    %13 = tpu.matmul %10, %12, %cst_9 {dimension_numbers = #tpu.dot_dimension_numbers<[1], [0], [0], [1], [0, 0, 1, 1], [], []>} : vector<16x72xf32>, vector<72x192xf32>, vector<16x192xf32> -> vector<16x192xf32>
    %14 = arith.addf %8, %13 : vector<16x192xf32>
    %15 = vector.extract_strided_slice %0 {offsets = [0, 2, 0], sizes = [1, 16, 72], strides = [1, 1, 1]} : vector<1x18x72xf32> to vector<1x16x72xf32>
    %16 = vector.shape_cast %15 : vector<1x16x72xf32> to vector<16x72xf32>
    %c2 = arith.constant 2 : index
    %c0_10 = arith.constant 0 : index
    %c0_11 = arith.constant 0 : index
    %17 = vector.load %arg2[%c2, %c0_10, %c0_11] : memref<3x72x192xf32, #tpu.memory_space<vmem>>, vector<1x72x192xf32>
    %18 = vector.shape_cast %17 : vector<1x72x192xf32> to vector<72x192xf32>
    %cst_12 = arith.constant dense<0.000000e+00> : vector<16x192xf32>
    %19 = tpu.matmul %16, %18, %cst_12 {dimension_numbers = #tpu.dot_dimension_numbers<[1], [0], [0], [1], [0, 0, 1, 1], [], []>} : vector<16x72xf32>, vector<72x192xf32>, vector<16x192xf32> -> vector<16x192xf32>
    %20 = arith.addf %14, %19 : vector<16x192xf32>
    %21 = vector.extract_strided_slice %20 {offsets = [0, 0], sizes = [16, 64], strides = [1, 1]} : vector<16x192xf32> to vector<16x64xf32>
    %22 = vector.extract_strided_slice %20 {offsets = [0, 64], sizes = [16, 64], strides = [1, 1]} : vector<16x192xf32> to vector<16x64xf32>
    %23 = vector.extract_strided_slice %20 {offsets = [0, 128], sizes = [16, 64], strides = [1, 1]} : vector<16x192xf32> to vector<16x64xf32>
    %24 = arith.mulf %21, %22 : vector<16x64xf32>
    %c0_13 = arith.constant 0 : index
    %c0_14 = arith.constant 0 : index
    %25 = vector.load %arg4[%c0_13, %c0_14] : memref<64x128xf32, #tpu.memory_space<vmem>>, vector<64x128xf32>
    %cst_15 = arith.constant dense<0.000000e+00> : vector<16x128xf32>
    %26 = tpu.matmul %24, %25, %cst_15 {dimension_numbers = #tpu.dot_dimension_numbers<[1], [0], [0], [1], [0, 0, 1, 1], [], []>} : vector<16x64xf32>, vector<64x128xf32>, vector<16x128xf32> -> vector<16x128xf32>
    %c0_16 = arith.constant 0 : index
    %c0_17 = arith.constant 0 : index
    %27 = vector.load %arg5[%c0_16, %c0_17] : memref<64x128xf32, #tpu.memory_space<vmem>>, vector<64x128xf32>
    %cst_18 = arith.constant dense<0.000000e+00> : vector<16x128xf32>
    %28 = tpu.matmul %23, %27, %cst_18 {dimension_numbers = #tpu.dot_dimension_numbers<[1], [0], [0], [1], [0, 0, 1, 1], [], []>} : vector<16x64xf32>, vector<64x128xf32>, vector<16x128xf32> -> vector<16x128xf32>
    %29 = arith.addf %26, %28 : vector<16x128xf32>
    %c0_19 = arith.constant 0 : index
    %c0_20 = arith.constant 0 : index
    %30 = vector.load %arg6[%c0_19, %c0_20] : memref<1x128xf32, #tpu.memory_space<vmem>>, vector<1x128xf32>
    %31 = vector.broadcast %30 : vector<1x128xf32> to vector<16x128xf32>
    %32 = arith.addf %29, %31 : vector<16x128xf32>
    %33 = vector.shape_cast %32 : vector<16x128xf32> to vector<1x16x128xf32>
    %c0_21 = arith.constant 0 : index
    %c0_22 = arith.constant 0 : index
    %c0_23 = arith.constant 0 : index
    %34 = vector.load %arg7[%c0_21, %c0_22, %c0_23] : memref<1x16x128xf32, #tpu.memory_space<vmem>>, vector<1x16x128xf32>
    tpu.vector_store %arg7[%c0_21, %c0_22, %c0_23], %33 {strides = array<i32>} : memref<1x16x128xf32, #tpu.memory_space<vmem>>, vector<1x16x128xf32>,
    return
  }
  func.func @transform_0(%arg0: i32) -> (i32, i32, i32) {
    %c0_i32 = arith.constant 0 : i32
    %c0_i32_0 = arith.constant 0 : i32
    %c0_i32_1 = arith.constant 0 : i32
    return %arg0, %c0_i32, %c0_i32_0 : i32, i32, i32
  }
  func.func @transform_1(%arg0: i32) -> (i32, i32, i32) {
    %c0_i32 = arith.constant 0 : i32
    %c0_i32_0 = arith.constant 0 : i32
    %c0_i32_1 = arith.constant 0 : i32
    %c0_i32_2 = arith.constant 0 : i32
    return %c0_i32, %c0_i32_0, %c0_i32_1 : i32, i32, i32
  }
  func.func @transform_2(%arg0: i32) -> (i32, i32) {
    %c0_i32 = arith.constant 0 : i32
    %c0_i32_0 = arith.constant 0 : i32
    %c0_i32_1 = arith.constant 0 : i32
    return %c0_i32, %c0_i32_0 : i32, i32
  }
  func.func @transform_3(%arg0: i32) -> (i32, i32) {
    %c0_i32 = arith.constant 0 : i32
    %c0_i32_0 = arith.constant 0 : i32
    %c0_i32_1 = arith.constant 0 : i32
    return %c0_i32, %c0_i32_0 : i32, i32
  }
  func.func @transform_4(%arg0: i32) -> (i32, i32) {
    %c0_i32 = arith.constant 0 : i32
    %c0_i32_0 = arith.constant 0 : i32
    %c0_i32_1 = arith.constant 0 : i32
    return %c0_i32, %c0_i32_0 : i32, i32
  }
  func.func @transform_5(%arg0: i32) -> (i32, i32) {
    %c0_i32 = arith.constant 0 : i32
    %c0_i32_0 = arith.constant 0 : i32
    %c0_i32_1 = arith.constant 0 : i32
    return %c0_i32, %c0_i32_0 : i32, i32
  }
  func.func @transform_6(%arg0: i32) -> (i32, i32, i32) {
    %c0_i32 = arith.constant 0 : i32
    %c0_i32_0 = arith.constant 0 : i32
    %c0_i32_1 = arith.constant 0 : i32
    return %arg0, %c0_i32, %c0_i32_0 : i32, i32, i32
  }
}

</mosaic_0001>

<llo_original>
// kernel: tile.23
$region0: #{tile.23}
  #allocation0 [shape = 's32[1]{0}', space=sflag, size = 0x4, scoped, tag = 'scoped memory for tile.23']
  %s0 = inlined_call_operand.vmem [shape: f32[4], index: 0, kind: input, shape index: {}]
  %s1 = inlined_call_operand.vmem [shape: f32[16,4], index: 1, kind: output, shape index: {}]
  // Predicated region
  $region2: #{tile.23} parent=0 // pred_check
    _
  $region3: #{tile.23} parent=0 // pred_check_branch
    %3 = sbr.rel (0) target = $region5
  $region4: #{tile.23} parent=0 // pred_region
    _
  $region5: #{tile.23} parent=0 // pred_fallthru
    _
  %v4 = vld [vmem:[%s0] ss:$0 sm:$0xff]
  %5 = vst [vmem:[%s1] sm:$0xff] %v4
  %s6 = scalar_lea.vmem %s1, 8
  %7 = vst [vmem:[%s6] sm:$0xff] %v4

// kernel: tile.24
$region0: #{tile.24}
  %s0 = inlined_call_operand.vmem [shape: f32[16,4], index: 0, kind: input, shape index: {}]
  %s1 = inlined_call_operand.vmem [shape: f32[64], index: 1, kind: output, shape index: {}]
  $region1: #{tile.24} parent=0
    #allocation0 [shape = 'u8[4096]{0}', space=vmem, size = 0x1000, scoped, tag = 'scoped mem for output reshape']
    %v2 = vld [vmem:[%s0] sm:$0x1]
    %vm3 = vcmask 31744
    %4 = vst.msk [vmem:[#allocation0] sm:$0x1] %vm3, %v2
    %s5 = scalar_lea.vmem %s0, 15
    %v6 = vld [vmem:[%s5] sm:$0x1]
    %7 = vrot.lane.b32.xlu0 %v6, 60
    %v8 = vpop.permute.xlu0 %7
    %vm9 = vcmask 523744
    %10 = vst.msk [vmem:[#allocation0] sm:$0x1] %vm9, %v8
    %s11 = scalar_lea.vmem %s0, 14
    %v12 = vld [vmem:[%s11] sm:$0x1]
    %13 = vrot.lane.b32.xlu0 %v12, 56
    %v14 = vpop.permute.xlu0 %13
    %vm15 = vcmask 490944
    %16 = vst.msk [vmem:[#allocation0] sm:$0x1] %vm15, %v14
    %s17 = scalar_lea.vmem %s0, 13
    %v18 = vld [vmem:[%s17] sm:$0x1]
    %19 = vrot.lane.b32.xlu0 %v18, 52
    %v20 = vpop.permute.xlu0 %19
    %vm21 = vcmask 458144
    %22 = vst.msk [vmem:[#allocation0] sm:$0x1] %vm21, %v20
    %s23 = scalar_lea.vmem %s0, 12
    %v24 = vld [vmem:[%s23] sm:$0x1]
    %25 = vrot.lane.b32.xlu0 %v24, 48
    %v26 = vpop.permute.xlu0 %25
    %vm27 = vcmask 425344
    %28 = vst.msk [vmem:[#allocation0] sm:$0x1] %vm27, %v26
    %s29 = scalar_lea.vmem %s0, 11
    %v30 = vld [vmem:[%s29] sm:$0x1]
    %31 = vrot.lane.b32.xlu0 %v30, 44
    %v32 = vpop.permute.xlu0 %31
    %vm33 = vcmask 392544
    %34 = vst.msk [vmem:[#allocation0] sm:$0x1] %vm33, %v32
    %s35 = scalar_lea.vmem %s0, 10
    %v36 = vld [vmem:[%s35] sm:$0x1]
    %37 = vrot.lane.b32.xlu0 %v36, 40
    %v38 = vpop.permute.xlu0 %37
    %vm39 = vcmask 359744
    %40 = vst.msk [vmem:[#allocation0] sm:$0x1] %vm39, %v38
    %s41 = scalar_lea.vmem %s0, 9
    %v42 = vld [vmem:[%s41] sm:$0x1]
    %43 = vrot.lane.b32.xlu0 %v42, 36
    %v44 = vpop.permute.xlu0 %43
    %vm45 = vcmask 326944
    %46 = vst.msk [vmem:[#allocation0] sm:$0x1] %vm45, %v44
    %s47 = scalar_lea.vmem %s0, 8
    %v48 = vld [vmem:[%s47] sm:$0x1]
    %49 = vrot.lane.b32.xlu0 %v48, 32
    %v50 = vpop.permute.xlu0 %49
    %vm51 = vcmask 294144
    %52 = vst.msk [vmem:[#allocation0] sm:$0x1] %vm51, %v50
    %s53 = scalar_lea.vmem %s0, 7
    %v54 = vld [vmem:[%s53] sm:$0x1]
    %55 = vrot.lane.b32.xlu0 %v54, 28
    %v56 = vpop.permute.xlu0 %55
    %vm57 = vcmask 261344
    %58 = vst.msk [vmem:[#allocation0] sm:$0x1] %vm57, %v56
    %s59 = scalar_lea.vmem %s0, 6
    %v60 = vld [vmem:[%s59] sm:$0x1]
    %61 = vrot.lane.b32.xlu0 %v60, 24
    %v62 = vpop.permute.xlu0 %61
    %vm63 = vcmask 228544
    %64 = vst.msk [vmem:[#allocation0] sm:$0x1] %vm63, %v62
    %s65 = scalar_lea.vmem %s0, 5
    %v66 = vld [vmem:[%s65] sm:$0x1]
    %67 = vrot.lane.b32.xlu0 %v66, 20
    %v68 = vpop.permute.xlu0 %67
    %vm69 = vcmask 195744
    %70 = vst.msk [vmem:[#allocation0] sm:$0x1] %vm69, %v68
    %s71 = scalar_lea.vmem %s0, 4
    %v72 = vld [vmem:[%s71] sm:$0x1]
    %73 = vrot.lane.b32.xlu0 %v72, 16
    %v74 = vpop.permute.xlu0 %73
    %vm75 = vcmask 162944
    %76 = vst.msk [vmem:[#allocation0] sm:$0x1] %vm75, %v74
    %s77 = scalar_lea.vmem %s0, 3
    %v78 = vld [vmem:[%s77] sm:$0x1]
    %79 = vrot.lane.b32.xlu0 %v78, 12
    %v80 = vpop.permute.xlu0 %79
    %vm81 = vcmask 130144
    %82 = vst.msk [vmem:[#allocation0] sm:$0x1] %vm81, %v80
    %s83 = scalar_lea.vmem %s0, 2
    %v84 = vld [vmem:[%s83] sm:$0x1]
    %85 = vrot.lane.b32.xlu0 %v84, 8
    %v86 = vpop.permute.xlu0 %85
    %vm87 = vcmask 97344
    %88 = vst.msk [vmem:[#allocation0] sm:$0x1] %vm87, %v86
    %s89 = scalar_lea.vmem %s0, 1
    %v90 = vld [vmem:[%s89] sm:$0x1]
    %91 = vrot.lane.b32.xlu0 %v90, 4
    %v92 = vpop.permute.xlu0 %91
    %vm93 = vcmask 64544
    %94 = vst.msk [vmem:[#allocation0] sm:$0x1] %vm93, %v92
    %s96 = sshllo.u32 0, 1
    %v98 = vld [vmem:[#allocation0] sm:%s96]
    %s99 = sshllo.u32 0, 1
    %100 = vst [vmem:[%s1] sm:%s99] %v98

// kernel: tile.38
$region0: #{tile.38}
  #allocation0 [shape = 's32[1]{0}', space=sflag, size = 0x4, scoped, tag = 'scoped memory for tile.38']
  %s0 = inlined_call_operand.vmem [shape: f32[8], index: 0, kind: input, shape index: {}]
  %s1 = inlined_call_operand.vmem [shape: f32[16,8], index: 1, kind: output, shape index: {}]
  // Predicated region
  $region2: #{tile.38} parent=0 // pred_check
    _
  $region3: #{tile.38} parent=0 // pred_check_branch
    %3 = sbr.rel (0) target = $region5
  $region4: #{tile.38} parent=0 // pred_region
    _
  $region5: #{tile.38} parent=0 // pred_fallthru
    _
  %v4 = vld [vmem:[%s0] ss:$0 sm:$0xff]
  %5 = vst [vmem:[%s1] sm:$0xff] %v4
  %s6 = scalar_lea.vmem %s1, 8
  %7 = vst [vmem:[%s6] sm:$0xff] %v4

// kernel: tile.39
$region0: #{tile.39}
  %s0 = inlined_call_operand.vmem [shape: f32[16,8], index: 0, kind: input, shape index: {}]
  %s1 = inlined_call_operand.vmem [shape: f32[1,128], index: 1, kind: output, shape index: {}]
  $region1: #{tile.39} parent=0
    #allocation0 [shape = 'u8[4096]{0}', space=vmem, size = 0x1000, scoped, tag = 'scoped mem for output reshape']
    %v2 = vld [vmem:[%s0] sm:$0x1]
    %vm3 = vcmask 64512
    %4 = vst.msk [vmem:[#allocation0] sm:$0x1] %vm3, %v2
    %s5 = scalar_lea.vmem %s0, 15
    %v6 = vld [vmem:[%s5] sm:$0x1]
    %7 = vrot.lane.b32.xlu0 %v6, 120
    %v8 = vpop.permute.xlu0 %7
    %vm9 = vcmask 1048512
    %10 = vst.msk [vmem:[#allocation0] sm:$0x1] %vm9, %v8
    %s11 = scalar_lea.vmem %s0, 14
    %v12 = vld [vmem:[%s11] sm:$0x1]
    %13 = vrot.lane.b32.xlu0 %v12, 112
    %v14 = vpop.permute.xlu0 %13
    %vm15 = vcmask 982912
    %16 = vst.msk [vmem:[#allocation0] sm:$0x1] %vm15, %v14
    %s17 = scalar_lea.vmem %s0, 13
    %v18 = vld [vmem:[%s17] sm:$0x1]
    %19 = vrot.lane.b32.xlu0 %v18, 104
    %v20 = vpop.permute.xlu0 %19
    %vm21 = vcmask 917312
    %22 = vst.msk [vmem:[#allocation0] sm:$0x1] %vm21, %v20
    %s23 = scalar_lea.vmem %s0, 12
    %v24 = vld [vmem:[%s23] sm:$0x1]
    %25 = vrot.lane.b32.xlu0 %v24, 96
    %v26 = vpop.permute.xlu0 %25
    %vm27 = vcmask 851712
    %28 = vst.msk [vmem:[#allocation0] sm:$0x1] %vm27, %v26
    %s29 = scalar_lea.vmem %s0, 11
    %v30 = vld [vmem:[%s29] sm:$0x1]
    %31 = vrot.lane.b32.xlu0 %v30, 88
    %v32 = vpop.permute.xlu0 %31
    %vm33 = vcmask 786112
    %34 = vst.msk [vmem:[#allocation0] sm:$0x1] %vm33, %v32
    %s35 = scalar_lea.vmem %s0, 10
    %v36 = vld [vmem:[%s35] sm:$0x1]
    %37 = vrot.lane.b32.xlu0 %v36, 80
    %v38 = vpop.permute.xlu0 %37
    %vm39 = vcmask 720512
    %40 = vst.msk [vmem:[#allocation0] sm:$0x1] %vm39, %v38
    %s41 = scalar_lea.vmem %s0, 9
    %v42 = vld [vmem:[%s41] sm:$0x1]
    %43 = vrot.lane.b32.xlu0 %v42, 72
    %v44 = vpop.permute.xlu0 %43
    %vm45 = vcmask 654912
    %46 = vst.msk [vmem:[#allocation0] sm:$0x1] %vm45, %v44
    %s47 = scalar_lea.vmem %s0, 8
    %v48 = vld [vmem:[%s47] sm:$0x1]
    %49 = vrot.lane.b32.xlu0 %v48, 64
    %v50 = vpop.permute.xlu0 %49
    %vm51 = vcmask 589312
    %52 = vst.msk [vmem:[#allocation0] sm:$0x1] %vm51, %v50
    %s53 = scalar_lea.vmem %s0, 7
    %v54 = vld [vmem:[%s53] sm:$0x1]
    %55 = vrot.lane.b32.xlu0 %v54, 56
    %v56 = vpop.permute.xlu0 %55
    %vm57 = vcmask 523712
    %58 = vst.msk [vmem:[#allocation0] sm:$0x1] %vm57, %v56
    %s59 = scalar_lea.vmem %s0, 6
    %v60 = vld [vmem:[%s59] sm:$0x1]
    %61 = vrot.lane.b32.xlu0 %v60, 48
    %v62 = vpop.permute.xlu0 %61
    %vm63 = vcmask 458112
    %64 = vst.msk [vmem:[#allocation0] sm:$0x1] %vm63, %v62
    %s65 = scalar_lea.vmem %s0, 5
    %v66 = vld [vmem:[%s65] sm:$0x1]
    %67 = vrot.lane.b32.xlu0 %v66, 40
    %v68 = vpop.permute.xlu0 %67
    %vm69 = vcmask 392512
    %70 = vst.msk [vmem:[#allocation0] sm:$0x1] %vm69, %v68
    %s71 = scalar_lea.vmem %s0, 4
    %v72 = vld [vmem:[%s71] sm:$0x1]
    %73 = vrot.lane.b32.xlu0 %v72, 32
    %v74 = vpop.permute.xlu0 %73
    %vm75 = vcmask 326912
    %76 = vst.msk [vmem:[#allocation0] sm:$0x1] %vm75, %v74
    %s77 = scalar_lea.vmem %s0, 3
    %v78 = vld [vmem:[%s77] sm:$0x1]
    %79 = vrot.lane.b32.xlu0 %v78, 24
    %v80 = vpop.permute.xlu0 %79
    %vm81 = vcmask 261312
    %82 = vst.msk [vmem:[#allocation0] sm:$0x1] %vm81, %v80
    %s83 = scalar_lea.vmem %s0, 2
    %v84 = vld [vmem:[%s83] sm:$0x1]
    %85 = vrot.lane.b32.xlu0 %v84, 16
    %v86 = vpop.permute.xlu0 %85
    %vm87 = vcmask 195712
    %88 = vst.msk [vmem:[#allocation0] sm:$0x1] %vm87, %v86
    %s89 = scalar_lea.vmem %s0, 1
    %v90 = vld [vmem:[%s89] sm:$0x1]
    %91 = vrot.lane.b32.xlu0 %v90, 8
    %v92 = vpop.permute.xlu0 %91
    %vm93 = vcmask 130112
    %94 = vst.msk [vmem:[#allocation0] sm:$0x1] %vm93, %v92
    %s96 = sshllo.u32 0, 1
    %v98 = vld [vmem:[#allocation0] sm:%s96]
    %s99 = sshllo.u32 0, 1
    %100 = vst [vmem:[%s1] sm:%s99] %v98

// kernel: plat_contrast_forward.1
$region0: #{plat_contrast_forward.1}
  #allocation0 [shape = 'u32[]', space=smem, size = 0x4, offset = 0x4, fixed_abs, tag = 'smem constant byte address 0x4 - core index']
  #allocation1 [shape = 'u32[144,128]{1,0:T(1,128)}', space=vmem, size = 0x12000, scoped, tag = 'internal scratch']
  %s0 = inlined_call_operand.vmem [shape: f32[2,18,72], index: 0, kind: input, shape index: {}]
  %s1 = inlined_call_operand.vmem [shape: f32[3,72,192], index: 1, kind: input, shape index: {}]
  %s2 = inlined_call_operand.vmem [shape: f32[1,192], index: 2, kind: input, shape index: {}]
  %s3 = inlined_call_operand.vmem [shape: f32[64,128], index: 3, kind: input, shape index: {}]
  %s4 = inlined_call_operand.vmem [shape: f32[64,128], index: 4, kind: input, shape index: {}]
  %s5 = inlined_call_operand.vmem [shape: f32[1,128], index: 5, kind: input, shape index: {}]
  %s6 = inlined_call_operand.vmem [shape: f32[2,16,128], index: 6, kind: output, shape index: {}]
  %s7 = sld [smem:[#allocation0]]
  $region57: #{plat_contrast_forward.1} parent=0
    _
  %s9 = ssub.s32 1, %s7
  %s10 = scalar_select 0, %s9, %s7
  loop: start=0, step=1, limit=4
  $region2: #{plat_contrast_forward.1} parent=0 // loop_pre_header
    _
  $region3: #{plat_contrast_forward.1} parent=0 // loop_header
    %s12 = sphi 0, %s16
    %p13 = scmp.ge.s32.totalorder %s12, 4
    %s22 = sphi 0, %s24
    %s25 = sphi 0, %s22
    %s26 = sphi 0, %s25
    %s42 = sphi 0, %s26
    %s46 = sphi 0, %s46
    %s48 = sphi 0, %s46
    %s49 = sphi 0, %s48
    %s63 = sphi 0, %s49
    %s67 = sphi 0, %s67
    %s69 = sphi 0, %s67
    %s70 = sphi 0, %s69
    %s84 = sphi 0, %s70
    %s88 = sphi 0, %s88
    %s90 = sphi 0, %s88
    %s91 = sphi 0, %s90
    %s105 = sphi 0, %s91
    %s109 = sphi 0, %s109
    %s111 = sphi 0, %s109
    %s112 = sphi 0, %s111
    %s126 = sphi 0, %s112
    %s130 = sphi 0, %s130
    %s132 = sphi 0, %s130
    %s133 = sphi 0, %s132
    %s147 = sphi 0, %s133
    %s153 = sphi 0, %s155
    %s156 = sphi 0, %s153
    %s157 = sphi 0, %s156
    %s173 = sphi 0, %s157
  $region4: #{plat_contrast_forward.1} parent=0 // loop_header_branch
    %15 = sbr.rel (%p13) target = $region8
  $region5: #{plat_contrast_forward.1} parent=0 // loop_body
    %s17 = ssub.s32 %s12, 1
    %s18 = ssub.s32 %s12, 2
    %s19 = sadd.s32 %s12, 1
    %s20 = ssub.s32 %s12, %s19
    %p21 = scmp.eq.s32.totalorder %s20, 0
    %s23 = sadd.s32 %s22, 1
    %s24 = scalar_select %p21, %s22, %s23
    %p27 = pneg %p21
    %p28 = scmp.eq.s32.totalorder %s12, 1
    %p29 = por %p27, %p28
    %p30 = scmp.ne.s32.totalorder %s22, %s25
    %p31 = scmp.eq.s32.totalorder %s12, 0
    %p32 = por %p30, %p31
    %p33 = scmp.ne.s32.totalorder %s22, %s25
    %p34 = scmp.eq.s32.totalorder %s17, 1
    %p35 = por %p33, %p34
    %p36 = scmp.ne.s32.totalorder %s25, %s26
    %p37 = scmp.eq.s32.totalorder %s17, 0
    %p38 = por %p36, %p37
    %p39 = scmp.ne.s32.totalorder %s25, %s26
    %p40 = scmp.eq.s32.totalorder %s18, 1
    %p41 = por %p39, %p40
    %p43 = scmp.ne.s32.totalorder %s26, %s42
    %p44 = scmp.eq.s32.totalorder %s18, 0
    %p45 = por %p43, %p44
    %s47 = sadd.s32 %s46, 1
    %p50 = scmp.eq.s32.totalorder %s12, 1
    %p51 = scmp.ne.s32.totalorder %s46, %s48
    %p52 = scmp.eq.s32.totalorder %s12, 0
    %p53 = por %p51, %p52
    %p54 = scmp.ne.s32.totalorder %s46, %s48
    %p55 = scmp.eq.s32.totalorder %s17, 1
    %p56 = por %p54, %p55
    %p57 = scmp.ne.s32.totalorder %s48, %s49
    %p58 = scmp.eq.s32.totalorder %s17, 0
    %p59 = por %p57, %p58
    %p60 = scmp.ne.s32.totalorder %s48, %s49
    %p61 = scmp.eq.s32.totalorder %s18, 1
    %p62 = por %p60, %p61
    %p64 = scmp.ne.s32.totalorder %s49, %s63
    %p65 = scmp.eq.s32.totalorder %s18, 0
    %p66 = por %p64, %p65
    %s68 = sadd.s32 %s67, 1
    %p71 = scmp.eq.s32.totalorder %s12, 1
    %p72 = scmp.ne.s32.totalorder %s67, %s69
    %p73 = scmp.eq.s32.totalorder %s12, 0
    %p74 = por %p72, %p73
    %p75 = scmp.ne.s32.totalorder %s67, %s69
    %p76 = scmp.eq.s32.totalorder %s17, 1
    %p77 = por %p75, %p76
    %p78 = scmp.ne.s32.totalorder %s69, %s70
    %p79 = scmp.eq.s32.totalorder %s17, 0
    %p80 = por %p78, %p79
    %p81 = scmp.ne.s32.totalorder %s69, %s70
    %p82 = scmp.eq.s32.totalorder %s18, 1
    %p83 = por %p81, %p82
    %p85 = scmp.ne.s32.totalorder %s70, %s84
    %p86 = scmp.eq.s32.totalorder %s18, 0
    %p87 = por %p85, %p86
    %s89 = sadd.s32 %s88, 1
    %p92 = scmp.eq.s32.totalorder %s12, 1
    %p93 = scmp.ne.s32.totalorder %s88, %s90
    %p94 = scmp.eq.s32.totalorder %s12, 0
    %p95 = por %p93, %p94
    %p96 = scmp.ne.s32.totalorder %s88, %s90
    %p97 = scmp.eq.s32.totalorder %s17, 1
    %p98 = por %p96, %p97
    %p99 = scmp.ne.s32.totalorder %s90, %s91
    %p100 = scmp.eq.s32.totalorder %s17, 0
    %p101 = por %p99, %p100
    %p102 = scmp.ne.s32.totalorder %s90, %s91
    %p103 = scmp.eq.s32.totalorder %s18, 1
    %p104 = por %p102, %p103
    %p106 = scmp.ne.s32.totalorder %s91, %s105
    %p107 = scmp.eq.s32.totalorder %s18, 0
    %p108 = por %p106, %p107
    %s110 = sadd.s32 %s109, 1
    %p113 = scmp.eq.s32.totalorder %s12, 1
    %p114 = scmp.ne.s32.totalorder %s109, %s111
    %p115 = scmp.eq.s32.totalorder %s12, 0
    %p116 = por %p114, %p115
    %p117 = scmp.ne.s32.totalorder %s109, %s111
    %p118 = scmp.eq.s32.totalorder %s17, 1
    %p119 = por %p117, %p118
    %p120 = scmp.ne.s32.totalorder %s111, %s112
    %p121 = scmp.eq.s32.totalorder %s17, 0
    %p122 = por %p120, %p121
    %p123 = scmp.ne.s32.totalorder %s111, %s112
    %p124 = scmp.eq.s32.totalorder %s18, 1
    %p125 = por %p123, %p124
    %p127 = scmp.ne.s32.totalorder %s112, %s126
    %p128 = scmp.eq.s32.totalorder %s18, 0
    %p129 = por %p127, %p128
    %s131 = sadd.s32 %s130, 1
    %p134 = scmp.eq.s32.totalorder %s12, 1
    %p135 = scmp.ne.s32.totalorder %s130, %s132
    %p136 = scmp.eq.s32.totalorder %s12, 0
    %p137 = por %p135, %p136
    %p138 = scmp.ne.s32.totalorder %s130, %s132
    %p139 = scmp.eq.s32.totalorder %s17, 1
    %p140 = por %p138, %p139
    %p141 = scmp.ne.s32.totalorder %s132, %s133
    %p142 = scmp.eq.s32.totalorder %s17, 0
    %p143 = por %p141, %p142
    %p144 = scmp.ne.s32.totalorder %s132, %s133
    %p145 = scmp.eq.s32.totalorder %s18, 1
    %p146 = por %p144, %p145
    %p148 = scmp.ne.s32.totalorder %s133, %s147
    %p149 = scmp.eq.s32.totalorder %s18, 0
    %p150 = por %p148, %p149
    %s151 = ssub.s32 %s12, %s19
    %p152 = scmp.eq.s32.totalorder %s151, 0
    %s154 = sadd.s32 %s153, 1
    %s155 = scalar_select %p152, %s153, %s154
    %p158 = pneg %p152
    %p159 = scmp.eq.s32.totalorder %s12, 1
    %p160 = por %p158, %p159
    %p161 = scmp.ne.s32.totalorder %s153, %s156
    %p162 = scmp.eq.s32.totalorder %s12, 0
    %p163 = por %p161, %p162
    %p164 = scmp.ne.s32.totalorder %s153, %s156
    %p165 = scmp.eq.s32.totalorder %s17, 1
    %p166 = por %p164, %p165
    %p167 = scmp.ne.s32.totalorder %s156, %s157
    %p168 = scmp.eq.s32.totalorder %s17, 0
    %p169 = por %p167, %p168
    %p170 = scmp.ne.s32.totalorder %s156, %s157
    %p171 = scmp.eq.s32.totalorder %s18, 1
    %p172 = por %p170, %p171
    %p174 = scmp.ne.s32.totalorder %s157, %s173
    %p175 = scmp.eq.s32.totalorder %s18, 0
    %p176 = por %p174, %p175
    %p177 = scmp.le.s32.totalorder 1, %s12
    %p178 = scmp.lt.s32.totalorder %s12, 3
    %p179 = pnand %p177, %p178
    %p180 = pneg %p179
    // Predicated region
    $region9: #{plat_contrast_forward.1} parent=5 // pred_check
      _
    $region10: #{plat_contrast_forward.1} parent=5 // pred_check_branch
      %182 = sbr.rel (%p179) target = $region12
    $region11: #{plat_contrast_forward.1} parent=5 // pred_region
      %s183 = ssub.s32 %s12, 1
      // Predicated region
      $region13: #{plat_contrast_forward.1} parent=11 // pred_check
        %p184 = pneg %p59
      $region14: #{plat_contrast_forward.1} parent=11 // pred_check_branch
        %186 = sbr.rel (%p184) target = $region16
      $region15: #{plat_contrast_forward.1} parent=11 // pred_region
        _
      $region16: #{plat_contrast_forward.1} parent=11 // pred_fallthru
        _
      // Predicated region
      $region17: #{plat_contrast_forward.1} parent=11 // pred_check
        %p187 = pneg %p80
      $region18: #{plat_contrast_forward.1} parent=11 // pred_check_branch
        %189 = sbr.rel (%p187) target = $region20
      $region19: #{plat_contrast_forward.1} parent=11 // pred_region
        _
      $region20: #{plat_contrast_forward.1} parent=11 // pred_fallthru
        _
      // Predicated region
      $region21: #{plat_contrast_forward.1} parent=11 // pred_check
        %p190 = pneg %p101
      $region22: #{plat_contrast_forward.1} parent=11 // pred_check_branch
        %192 = sbr.rel (%p190) target = $region24
      $region23: #{plat_contrast_forward.1} parent=11 // pred_region
        _
      $region24: #{plat_contrast_forward.1} parent=11 // pred_fallthru
        _
      // Predicated region
      $region25: #{plat_contrast_forward.1} parent=11 // pred_check
        %p193 = pneg %p122
      $region26: #{plat_contrast_forward.1} parent=11 // pred_check_branch
        %195 = sbr.rel (%p193) target = $region28
      $region27: #{plat_contrast_forward.1} parent=11 // pred_region
        _
      $region28: #{plat_contrast_forward.1} parent=11 // pred_fallthru
        _
      // Predicated region
      $region29: #{plat_contrast_forward.1} parent=11 // pred_check
        %p196 = pneg %p143
      $region30: #{plat_contrast_forward.1} parent=11 // pred_check_branch
        %198 = sbr.rel (%p196) target = $region32
      $region31: #{plat_contrast_forward.1} parent=11 // pred_region
        _
      $region32: #{plat_contrast_forward.1} parent=11 // pred_fallthru
        _
    $region12: #{plat_contrast_forward.1} parent=5 // pred_fallthru
      _
    %p199 = scmp.lt.s32.totalorder %s12, 2
    // Predicated region
    $region33: #{plat_contrast_forward.1} parent=5 // pred_check
      %p200 = pneg %p199
    $region34: #{plat_contrast_forward.1} parent=5 // pred_check_branch
      %202 = sbr.rel (%p200) target = $region36
    $region35: #{plat_contrast_forward.1} parent=5 // pred_region
      // Predicated region
      $region37: #{plat_contrast_forward.1} parent=35 // pred_check
        %p203 = pneg %p32
      $region38: #{plat_contrast_forward.1} parent=35 // pred_check_branch
        %205 = sbr.rel (%p203) target = $region40
      $region39: #{plat_contrast_forward.1} parent=35 // pred_region
        %p206 = scmp.lt.s32.totalorder %s12, 1
        %s207 = scalar_select %p206, %s12, 1
        %s208 = smul.addr %s207, 3
        %s209 = smul.addr %s208, 8
        %s210 = scalar_lea.vmem %s0, %s209
      $region40: #{plat_contrast_forward.1} parent=35 // pred_fallthru
        _
    $region36: #{plat_contrast_forward.1} parent=5 // pred_fallthru
      _
    %p211 = scmp.le.s32.totalorder 1, %s12
    %p212 = scmp.lt.s32.totalorder %s12, 3
    %p213 = pnand %p211, %p212
    %p214 = pneg %p213
    // Predicated region
    $region41: #{plat_contrast_forward.1} parent=5 // pred_check
      _
    $region42: #{plat_contrast_forward.1} parent=5 // pred_check_branch
      %216 = sbr.rel (%p213) target = $region44
    $region43: #{plat_contrast_forward.1} parent=5 // pred_region
      %s217 = ssub.s32 %s12, 1
      %p218 = scmp.lt.s32.totalorder %s17, 1
      %s219 = scalar_select %p218, %s17, 1
      %s220 = smul.addr %s219, 3
      %s221 = smul.addr %s220, 8
      %s222 = scalar_lea.vmem %s0, %s221
      %p223 = pneg %p38
      %p224 = pneg %p35
      %p225 = pneg %p59
      %p226 = pneg %p56
      %p227 = pneg %p80
      %p228 = pneg %p77
      %p229 = pneg %p101
      %p230 = pneg %p98
      %p231 = pneg %p122
      %p232 = pneg %p119
      %p233 = pneg %p143
      %p234 = pneg %p140
      %p235 = pneg %p169
      %p236 = pneg %p166
      %p237 = scmp.lt.s32.totalorder %s17, 1
      %s238 = scalar_select %p237, %s17, 1
      %s239 = smul.addr %s238, 2
      %s240 = smul.addr %s239, 8
      %s241 = scalar_lea.vmem %s6, %s240
      %p242 = scmp.lt.s32.totalorder %s17, 1
      %s243 = scalar_select %p242, %s17, 1
      %s244 = smul.addr %s243, 3
      %s245 = smul.addr %s244, 8
      %s246 = scalar_lea.vmem %s0, %s245
      %p247 = scmp.lt.s32.totalorder %s17, 1
      %s248 = scalar_select %p247, %s17, 1
      %s249 = smul.addr %s248, 2
      %s250 = smul.addr %s249, 8
      %s251 = scalar_lea.vmem %s6, %s250
      %v252 = vld [vmem:[%s246] sm:$0xff]
      %v253 = vld [vmem:[%s246 + $0x8] sm:$0xff]
      %v254 = vld [vmem:[%s246 + $0x10] sm:$0x3]
      %v255 = vld [vmem:[%s2] sm:$0x3]
      %v256 = vld [vmem:[%s1] sm:$0xff]
      %v257 = vld [vmem:[%s1 + $0x8] sm:$0xff]
      %v258 = vld [vmem:[%s1 + $0x10] sm:$0xff]
      %v259 = vld [vmem:[%s1 + $0x18] sm:$0xff]
      %v260 = vld [vmem:[%s1 + $0x20] sm:$0xff]
      %v261 = vld [vmem:[%s1 + $0x28] sm:$0xff]
      %v262 = vld [vmem:[%s1 + $0x30] sm:$0xff]
      %v263 = vld [vmem:[%s1 + $0x38] sm:$0xff]
      %v264 = vld [vmem:[%s1 + $0x40] sm:$0xff]
      %v265 = vld [vmem:[%s1 + $0x48] sm:$0xff]
      %v266 = vld [vmem:[%s1 + $0x50] sm:$0xff]
      %v267 = vld [vmem:[%s1 + $0x58] sm:$0xff]
      %v268 = vld [vmem:[%s1 + $0x60] sm:$0xff]
      %v269 = vld [vmem:[%s1 + $0x68] sm:$0xff]
      %v270 = vld [vmem:[%s1 + $0x70] sm:$0xff]
      %v271 = vld [vmem:[%s1 + $0x78] sm:$0xff]
      %v272 = vld [vmem:[%s1 + $0x80] sm:$0xff]
      %v273 = vld [vmem:[%s1 + $0x88] sm:$0xff]
      %vm274 = vcmask 588800
      %v276 = vsel %vm274, %v252, 0
      %v279 = vsel %vm274, %v253, 0
      %281 = vmatprep.subr.mxu0 %v257
      %282 = vmatpush1.msra.mxu0 %v256
      %283 = vmatprep.subr.mxu0 %v259
      %284 = vmatpush1.msra.mxu0 %v258
      %285 = vmatprep.subr.mxu0 %v261
      %286 = vmatpush1.msra.mxu0 %v260
      %287 = vmatprep.subr.mxu0 %v263
      %288 = vmatpush1.msra.mxu0 %v262
      %289 = vmatprep.subr.mxu0 %v265
      %290 = vmatpush1.msra.mxu0 %v264
      %291 = vmatprep.subr.mxu0 %v267
      %292 = vmatpush1.msra.mxu0 %v266
      %293 = vmatprep.subr.mxu0 %v269
      %294 = vmatpush1.msra.mxu0 %v268
      %295 = vmatprep.subr.mxu0 %v271
      %296 = vmatpush1.msra.mxu0 %v270
      %297 = vmatprep.subr.mxu0 %v273
      %298 = vmatpush1.msra.mxu0 %v272
      %299 = vmatprep.subr.mxu0 0.0
      %300 = vmatpush1.msra.mxu0 0.0
      %301 = vmatprep.subr.mxu0 0.0
      %302 = vmatpush1.msra.mxu0 0.0
      %303 = vmatprep.subr.mxu0 0.0
      %304 = vmatpush1.msra.mxu0 0.0
      %305 = vmatprep.subr.mxu0 0.0
      %306 = vmatpush1.msra.mxu0 0.0
      %307 = vmatprep.subr.mxu0 0.0
      %308 = vmatpush1.msra.mxu0 0.0
      %309 = vmatprep.subr.mxu0 0.0
      %310 = vmatpush1.msra.mxu0 0.0
      %311 = vmatprep.subr.mxu0 0.0
      %312 = vmatpush1.msra.mxu0 0.0
      %313 = vmatprep.subr.mxu0 0.0
      %314 = vmatpush1.msra.mxu0 0.0
      %315 = vmatprep.subr.mxu0 0.0
      %316 = vmatpush1.msra.mxu0 0.0
      %317 = vmatprep.subr.mxu0 0.0
      %318 = vmatpush1.msra.mxu0 0.0
      %319 = vmatprep.subr.mxu0 0.0
      %320 = vmatpush1.msra.mxu0 0.0
      %321 = vmatprep.subr.mxu0 0.0
      %322 = vmatpush1.msra.mxu0 0.0
      %323 = vmatprep.subr.mxu0 0.0
      %324 = vmatpush1.msra.mxu0 0.0
      %325 = vmatprep.subr.mxu0 0.0
      %326 = vmatpush1.msra.mxu0 0.0
      %327 = vmatprep.subr.mxu0 0.0
      %328 = vmatpush1.msra.mxu0 0.0
      %329 = vmatprep.subr.mxu0 0.0
      %330 = vmatpush1.msra.mxu0 0.0
      %331 = vmatprep.subr.mxu0 0.0
      %332 = vmatpush1.msra.mxu0 0.0
      %333 = vmatprep.subr.mxu0 0.0
      %334 = vmatpush1.msra.mxu0 0.0
      %335 = vmatprep.subr.mxu0 0.0
      %336 = vmatpush1.msra.mxu0 0.0
      %337 = vmatprep.subr.mxu0 0.0
      %338 = vmatpush1.msra.mxu0 0.0
      %339 = vmatprep.subr.mxu0 0.0
      %340 = vmatpush1.msra.mxu0 0.0
      %341 = vmatprep.subr.mxu0 0.0
      %342 = vmatpush1.msra.mxu0 0.0
      %343 = vmatprep.subr.mxu0 0.0
      %344 = vmatpush1.msra.mxu0 0.0
      %345 = vmatprep.mubr.f32.mxu0 0.0
      %346 = vmatmul.mubr.f32.gmra.mrb[0].mxu0 %v276
      %v347 = vpop.f32.mrb[0].mxu0
      %v348 = vadd.f32 0.0, %v347
      %v349 = vpop.f32.mrb[0].mxu0
      %v350 = vadd.f32 0.0, %v349
      %351 = vmatprep.mubr.f32.mxu0 0.0
      %352 = vmatmul.mubr.f32.gmra.mrb[0].mxu0 %v279
      %v353 = vpop.f32.mrb[0].mxu0
      %v354 = vadd.f32 0.0, %v353
      %v355 = vpop.f32.mrb[0].mxu0
      %v356 = vadd.f32 0.0, %v355
      %357 = vdwg.mxu0
      %v359 = vlaneseq
      %v360 = vshrl.u32 %v359, 7
      %v361 = vsub.s32 0, %v360
      %v362 = vrot.slane %v255, %v361
      %v363 = vlaneseq
      %v364 = vshrl.u32 %v363, 7
      %v365 = vsub.s32 1, %v364
      %v366 = vrot.slane %v255, %v365
      %v369 = vadd.f32 %v362, %v348
      %v370 = vadd.f32 %v366, %v350
      %v371 = vadd.f32 %v362, %v354
      %v372 = vadd.f32 %v366, %v356
      %s373 = scalar_lea.vmem %s1, 144
      %v374 = vld [vmem:[%s373] sm:$0xff]
      %v375 = vld [vmem:[%s373 + $0x8] sm:$0xff]
      %v376 = vld [vmem:[%s373 + $0x10] sm:$0xff]
      %v377 = vld [vmem:[%s373 + $0x18] sm:$0xff]
      %v378 = vld [vmem:[%s373 + $0x20] sm:$0xff]
      %v379 = vld [vmem:[%s373 + $0x28] sm:$0xff]
      %v380 = vld [vmem:[%s373 + $0x30] sm:$0xff]
      %v381 = vld [vmem:[%s373 + $0x38] sm:$0xff]
      %v382 = vld [vmem:[%s373 + $0x40] sm:$0xff]
      %v383 = vld [vmem:[%s373 + $0x48] sm:$0xff]
      %v384 = vld [vmem:[%s373 + $0x50] sm:$0xff]
      %v385 = vld [vmem:[%s373 + $0x58] sm:$0xff]
      %v386 = vld [vmem:[%s373 + $0x60] sm:$0xff]
      %v387 = vld [vmem:[%s373 + $0x68] sm:$0xff]
      %v388 = vld [vmem:[%s373 + $0x70] sm:$0xff]
      %v389 = vld [vmem:[%s373 + $0x78] sm:$0xff]
      %v390 = vld [vmem:[%s373 + $0x80] sm:$0xff]
      %v391 = vld [vmem:[%s373 + $0x88] sm:$0xff]
      %vm393 = vcmask 1046528
      %v394 = vrot.slane %v252, 1
      %v395 = vrot.slane %v253, 1
      %v396 = vsel %vm393, %v394, %v395
      %v397 = vrot.slane %v254, 1
      %v398 = vsel %vm393, %v395, %v397
      %v399 = vsel %vm274, %v396, 0
      %v401 = vsel %vm274, %v398, 0
      %403 = vmatprep.subr.mxu0 %v375
      %404 = vmatpush1.msra.mxu0 %v374
      %405 = vmatprep.subr.mxu0 %v377
      %406 = vmatpush1.msra.mxu0 %v376
      %407 = vmatprep.subr.mxu0 %v379
      %408 = vmatpush1.msra.mxu0 %v378
      %409 = vmatprep.subr.mxu0 %v381
      %410 = vmatpush1.msra.mxu0 %v380
      %411 = vmatprep.subr.mxu0 %v383
      %412 = vmatpush1.msra.mxu0 %v382
      %413 = vmatprep.subr.mxu0 %v385
      %414 = vmatpush1.msra.mxu0 %v384
      %415 = vmatprep.subr.mxu0 %v387
      %416 = vmatpush1.msra.mxu0 %v386
      %417 = vmatprep.subr.mxu0 %v389
      %418 = vmatpush1.msra.mxu0 %v388
      %419 = vmatprep.subr.mxu0 %v391
      %420 = vmatpush1.msra.mxu0 %v390
      %421 = vmatprep.subr.mxu0 0.0
      %422 = vmatpush1.msra.mxu0 0.0
      %423 = vmatprep.subr.mxu0 0.0
      %424 = vmatpush1.msra.mxu0 0.0
      %425 = vmatprep.subr.mxu0 0.0
      %426 = vmatpush1.msra.mxu0 0.0
      %427 = vmatprep.subr.mxu0 0.0
      %428 = vmatpush1.msra.mxu0 0.0
      %429 = vmatprep.subr.mxu0 0.0
      %430 = vmatpush1.msra.mxu0 0.0
      %431 = vmatprep.subr.mxu0 0.0
      %432 = vmatpush1.msra.mxu0 0.0
      %433 = vmatprep.subr.mxu0 0.0
      %434 = vmatpush1.msra.mxu0 0.0
      %435 = vmatprep.subr.mxu0 0.0
      %436 = vmatpush1.msra.mxu0 0.0
      %437 = vmatprep.subr.mxu0 0.0
      %438 = vmatpush1.msra.mxu0 0.0
      %439 = vmatprep.subr.mxu0 0.0
      %440 = vmatpush1.msra.mxu0 0.0
      %441 = vmatprep.subr.mxu0 0.0
      %442 = vmatpush1.msra.mxu0 0.0
      %443 = vmatprep.subr.mxu0 0.0
      %444 = vmatpush1.msra.mxu0 0.0
      %445 = vmatprep.subr.mxu0 0.0
      %446 = vmatpush1.msra.mxu0 0.0
      %447 = vmatprep.subr.mxu0 0.0
      %448 = vmatpush1.msra.mxu0 0.0
      %449 = vmatprep.subr.mxu0 0.0
      %450 = vmatpush1.msra.mxu0 0.0
      %451 = vmatprep.subr.mxu0 0.0
      %452 = vmatpush1.msra.mxu0 0.0
      %453 = vmatprep.subr.mxu0 0.0
      %454 = vmatpush1.msra.mxu0 0.0
      %455 = vmatprep.subr.mxu0 0.0
      %456 = vmatpush1.msra.mxu0 0.0
      %457 = vmatprep.subr.mxu0 0.0
      %458 = vmatpush1.msra.mxu0 0.0
      %459 = vmatprep.subr.mxu0 0.0
      %460 = vmatpush1.msra.mxu0 0.0
      %461 = vmatprep.subr.mxu0 0.0
      %462 = vmatpush1.msra.mxu0 0.0
      %463 = vmatprep.subr.mxu0 0.0
      %464 = vmatpush1.msra.mxu0 0.0
      %465 = vmatprep.subr.mxu0 0.0
      %466 = vmatpush1.msra.mxu0 0.0
      %467 = vmatprep.mubr.f32.mxu0 0.0
      %468 = vmatmul.mubr.f32.gmra.mrb[0].mxu0 %v399
      %v469 = vpop.f32.mrb[0].mxu0
      %v470 = vadd.f32 0.0, %v469
      %v471 = vpop.f32.mrb[0].mxu0
      %v472 = vadd.f32 0.0, %v471
      %473 = vmatprep.mubr.f32.mxu0 0.0
      %474 = vmatmul.mubr.f32.gmra.mrb[0].mxu0 %v401
      %v475 = vpop.f32.mrb[0].mxu0
      %v476 = vadd.f32 0.0, %v475
      %v477 = vpop.f32.mrb[0].mxu0
      %v478 = vadd.f32 0.0, %v477
      %479 = vdwg.mxu0
      %v480 = vadd.f32 %v369, %v470
      %v481 = vadd.f32 %v370, %v472
      %v482 = vadd.f32 %v371, %v476
      %v483 = vadd.f32 %v372, %v478
      %s484 = scalar_lea.vmem %s1, 288
      %v485 = vld [vmem:[%s484] sm:$0xff]
      %v486 = vld [vmem:[%s484 + $0x8] sm:$0xff]
      %v487 = vld [vmem:[%s484 + $0x10] sm:$0xff]
      %v488 = vld [vmem:[%s484 + $0x18] sm:$0xff]
      %v489 = vld [vmem:[%s484 + $0x20] sm:$0xff]
      %v490 = vld [vmem:[%s484 + $0x28] sm:$0xff]
      %v491 = vld [vmem:[%s484 + $0x30] sm:$0xff]
      %v492 = vld [vmem:[%s484 + $0x38] sm:$0xff]
      %v493 = vld [vmem:[%s484 + $0x40] sm:$0xff]
      %v494 = vld [vmem:[%s484 + $0x48] sm:$0xff]
      %v495 = vld [vmem:[%s484 + $0x50] sm:$0xff]
      %v496 = vld [vmem:[%s484 + $0x58] sm:$0xff]
      %v497 = vld [vmem:[%s484 + $0x60] sm:$0xff]
      %v498 = vld [vmem:[%s484 + $0x68] sm:$0xff]
      %v499 = vld [vmem:[%s484 + $0x70] sm:$0xff]
      %v500 = vld [vmem:[%s484 + $0x78] sm:$0xff]
      %v501 = vld [vmem:[%s484 + $0x80] sm:$0xff]
      %v502 = vld [vmem:[%s484 + $0x88] sm:$0xff]
      %vm503 = vcmask 1045504
      %v504 = vrot.slane %v252, 2
      %v505 = vrot.slane %v253, 2
      %v506 = vsel %vm503, %v504, %v505
      %v507 = vrot.slane %v254, 2
      %v508 = vsel %vm503, %v505, %v507
      %v509 = vsel %vm274, %v506, 0
      %v511 = vsel %vm274, %v508, 0
      %513 = vmatprep.subr.mxu0 %v486
      %514 = vmatpush1.msra.mxu0 %v485
      %515 = vmatprep.subr.mxu0 %v488
      %516 = vmatpush1.msra.mxu0 %v487
      %517 = vmatprep.subr.mxu0 %v490
      %518 = vmatpush1.msra.mxu0 %v489
      %519 = vmatprep.subr.mxu0 %v492
      %520 = vmatpush1.msra.mxu0 %v491
      %521 = vmatprep.subr.mxu0 %v494
      %522 = vmatpush1.msra.mxu0 %v493
      %523 = vmatprep.subr.mxu0 %v496
      %524 = vmatpush1.msra.mxu0 %v495
      %525 = vmatprep.subr.mxu0 %v498
      %526 = vmatpush1.msra.mxu0 %v497
      %527 = vmatprep.subr.mxu0 %v500
      %528 = vmatpush1.msra.mxu0 %v499
      %529 = vmatprep.subr.mxu0 %v502
      %530 = vmatpush1.msra.mxu0 %v501
      %531 = vmatprep.subr.mxu0 0.0
      %532 = vmatpush1.msra.mxu0 0.0
      %533 = vmatprep.subr.mxu0 0.0
      %534 = vmatpush1.msra.mxu0 0.0
      %535 = vmatprep.subr.mxu0 0.0
      %536 = vmatpush1.msra.mxu0 0.0
      %537 = vmatprep.subr.mxu0 0.0
      %538 = vmatpush1.msra.mxu0 0.0
      %539 = vmatprep.subr.mxu0 0.0
      %540 = vmatpush1.msra.mxu0 0.0
      %541 = vmatprep.subr.mxu0 0.0
      %542 = vmatpush1.msra.mxu0 0.0
      %543 = vmatprep.subr.mxu0 0.0
      %544 = vmatpush1.msra.mxu0 0.0
      %545 = vmatprep.subr.mxu0 0.0
      %546 = vmatpush1.msra.mxu0 0.0
      %547 = vmatprep.subr.mxu0 0.0
      %548 = vmatpush1.msra.mxu0 0.0
      %549 = vmatprep.subr.mxu0 0.0
      %550 = vmatpush1.msra.mxu0 0.0
      %551 = vmatprep.subr.mxu0 0.0
      %552 = vmatpush1.msra.mxu0 0.0
      %553 = vmatprep.subr.mxu0 0.0
      %554 = vmatpush1.msra.mxu0 0.0
      %555 = vmatprep.subr.mxu0 0.0
      %556 = vmatpush1.msra.mxu0 0.0
      %557 = vmatprep.subr.mxu0 0.0
      %558 = vmatpush1.msra.mxu0 0.0
      %559 = vmatprep.subr.mxu0 0.0
      %560 = vmatpush1.msra.mxu0 0.0
      %561 = vmatprep.subr.mxu0 0.0
      %562 = vmatpush1.msra.mxu0 0.0
      %563 = vmatprep.subr.mxu0 0.0
      %564 = vmatpush1.msra.mxu0 0.0
      %565 = vmatprep.subr.mxu0 0.0
      %566 = vmatpush1.msra.mxu0 0.0
      %567 = vmatprep.subr.mxu0 0.0
      %568 = vmatpush1.msra.mxu0 0.0
      %569 = vmatprep.subr.mxu0 0.0
      %570 = vmatpush1.msra.mxu0 0.0
      %571 = vmatprep.subr.mxu0 0.0
      %572 = vmatpush1.msra.mxu0 0.0
      %573 = vmatprep.subr.mxu0 0.0
      %574 = vmatpush1.msra.mxu0 0.0
      %575 = vmatprep.subr.mxu0 0.0
      %576 = vmatpush1.msra.mxu0 0.0
      %577 = vmatprep.mubr.f32.mxu0 0.0
      %578 = vmatmul.mubr.f32.gmra.mrb[0].mxu0 %v509
      %v579 = vpop.f32.mrb[0].mxu0
      %v580 = vadd.f32 0.0, %v579
      %v581 = vpop.f32.mrb[0].mxu0
      %v582 = vadd.f32 0.0, %v581
      %583 = vmatprep.mubr.f32.mxu0 0.0
      %584 = vmatmul.mubr.f32.gmra.mrb[0].mxu0 %v511
      %v585 = vpop.f32.mrb[0].mxu0
      %v586 = vadd.f32 0.0, %v585
      %v587 = vpop.f32.mrb[0].mxu0
      %v588 = vadd.f32 0.0, %v587
      %589 = vdwg.mxu0
      %v590 = vadd.f32 %v480, %v580
      %v591 = vadd.f32 %v481, %v582
      %v592 = vadd.f32 %v482, %v586
      %v593 = vadd.f32 %v483, %v588
      %596 = vrot.lane.b32.xlu0 %v590, 64
      %v597 = vpop.permute.xlu0 %596
      %598 = vrot.lane.b32.xlu0 %v592, 64
      %v599 = vpop.permute.xlu0 %598
      %v602 = vmul.f32 %v590, %v597
      %v603 = vmul.f32 %v592, %v599
      %v604 = vld [vmem:[%s3] sm:$0xff]
      %v605 = vld [vmem:[%s3 + $0x8] sm:$0xff]
      %v606 = vld [vmem:[%s3 + $0x10] sm:$0xff]
      %v607 = vld [vmem:[%s3 + $0x18] sm:$0xff]
      %v608 = vld [vmem:[%s3 + $0x20] sm:$0xff]
      %v609 = vld [vmem:[%s3 + $0x28] sm:$0xff]
      %v610 = vld [vmem:[%s3 + $0x30] sm:$0xff]
      %v611 = vld [vmem:[%s3 + $0x38] sm:$0xff]
      %v612 = vld [vmem:[%s4] sm:$0xff]
      %v613 = vld [vmem:[%s4 + $0x8] sm:$0xff]
      %v614 = vld [vmem:[%s4 + $0x10] sm:$0xff]
      %v615 = vld [vmem:[%s4 + $0x18] sm:$0xff]
      %v616 = vld [vmem:[%s4 + $0x20] sm:$0xff]
      %v617 = vld [vmem:[%s4 + $0x28] sm:$0xff]
      %v618 = vld [vmem:[%s4 + $0x30] sm:$0xff]
      %v619 = vld [vmem:[%s4 + $0x38] sm:$0xff]
      %vm620 = vcmask 523264
      %v622 = vsel %vm620, %v591, 0
      %v625 = vsel %vm620, %v593, 0
      %627 = vmatprep.subr.mxu0 0.0
      %628 = vmatpush1.msra.mxu0 %v612
      %629 = vmatprep.subr.mxu0 0.0
      %630 = vmatpush1.msra.mxu0 %v613
      %631 = vmatprep.subr.mxu0 0.0
      %632 = vmatpush1.msra.mxu0 %v614
      %633 = vmatprep.subr.mxu0 0.0
      %634 = vmatpush1.msra.mxu0 %v615
      %635 = vmatprep.subr.mxu0 0.0
      %636 = vmatpush1.msra.mxu0 %v616
      %637 = vmatprep.subr.mxu0 0.0
      %638 = vmatpush1.msra.mxu0 %v617
      %639 = vmatprep.subr.mxu0 0.0
      %640 = vmatpush1.msra.mxu0 %v618
      %641 = vmatprep.subr.mxu0 0.0
      %642 = vmatpush1.msra.mxu0 %v619
      %643 = vmatprep.subr.mxu0 0.0
      %644 = vmatpush1.msra.mxu0 0.0
      %645 = vmatprep.subr.mxu0 0.0
      %646 = vmatpush1.msra.mxu0 0.0
      %647 = vmatprep.subr.mxu0 0.0
      %648 = vmatpush1.msra.mxu0 0.0
      %649 = vmatprep.subr.mxu0 0.0
      %650 = vmatpush1.msra.mxu0 0.0
      %651 = vmatprep.subr.mxu0 0.0
      %652 = vmatpush1.msra.mxu0 0.0
      %653 = vmatprep.subr.mxu0 0.0
      %654 = vmatpush1.msra.mxu0 0.0
      %655 = vmatprep.subr.mxu0 0.0
      %656 = vmatpush1.msra.mxu0 0.0
      %657 = vmatprep.subr.mxu0 0.0
      %658 = vmatpush1.msra.mxu0 0.0
      %659 = vmatprep.subr.mxu0 0.0
      %660 = vmatpush1.msra.mxu0 0.0
      %661 = vmatprep.subr.mxu0 0.0
      %662 = vmatpush1.msra.mxu0 0.0
      %663 = vmatprep.subr.mxu0 0.0
      %664 = vmatpush1.msra.mxu0 0.0
      %665 = vmatprep.subr.mxu0 0.0
      %666 = vmatpush1.msra.mxu0 0.0
      %667 = vmatprep.subr.mxu0 0.0
      %668 = vmatpush1.msra.mxu0 0.0
      %669 = vmatprep.subr.mxu0 0.0
      %670 = vmatpush1.msra.mxu0 0.0
      %671 = vmatprep.subr.mxu0 0.0
      %672 = vmatpush1.msra.mxu0 0.0
      %673 = vmatprep.subr.mxu0 0.0
      %674 = vmatpush1.msra.mxu0 0.0
      %675 = vmatprep.subr.mxu0 0.0
      %676 = vmatpush1.msra.mxu0 0.0
      %677 = vmatprep.subr.mxu0 0.0
      %678 = vmatpush1.msra.mxu0 0.0
      %679 = vmatprep.subr.mxu0 0.0
      %680 = vmatpush1.msra.mxu0 0.0
      %681 = vmatprep.subr.mxu0 0.0
      %682 = vmatpush1.msra.mxu0 0.0
      %683 = vmatprep.subr.mxu0 0.0
      %684 = vmatpush1.msra.mxu0 0.0
      %685 = vmatprep.subr.mxu0 0.0
      %686 = vmatpush1.msra.mxu0 0.0
      %687 = vmatprep.subr.mxu0 0.0
      %688 = vmatpush1.msra.mxu0 0.0
      %689 = vmatprep.subr.mxu0 0.0
      %690 = vmatpush1.msra.mxu0 0.0
      %691 = vmatprep.mubr.f32.mxu0 0.0
      %692 = vmatmul.mubr.f32.gmra.mrb[0].mxu0 %v622
      %v693 = vpop.f32.mrb[0].mxu0
      %v694 = vadd.f32 0.0, %v693
      %v695 = vpop.f32.mrb[0].mxu0
      %696 = vmatprep.mubr.f32.mxu0 0.0
      %697 = vmatmul.mubr.f32.gmra.mrb[0].mxu0 %v625
      %v698 = vpop.f32.mrb[0].mxu0
      %v699 = vadd.f32 0.0, %v698
      %v700 = vpop.f32.mrb[0].mxu0
      %701 = vdwg.mxu0
      %v703 = vsel %vm620, %v602, 0
      %v706 = vsel %vm620, %v603, 0
      %708 = vmatprep.subr.mxu0 0.0
      %709 = vmatpush1.msra.mxu0 %v604
      %710 = vmatprep.subr.mxu0 0.0
      %711 = vmatpush1.msra.mxu0 %v605
      %712 = vmatprep.subr.mxu0 0.0
      %713 = vmatpush1.msra.mxu0 %v606
      %714 = vmatprep.subr.mxu0 0.0
      %715 = vmatpush1.msra.mxu0 %v607
      %716 = vmatprep.subr.mxu0 0.0
      %717 = vmatpush1.msra.mxu0 %v608
      %718 = vmatprep.subr.mxu0 0.0
      %719 = vmatpush1.msra.mxu0 %v609
      %720 = vmatprep.subr.mxu0 0.0
      %721 = vmatpush1.msra.mxu0 %v610
      %722 = vmatprep.subr.mxu0 0.0
      %723 = vmatpush1.msra.mxu0 %v611
      %724 = vmatprep.subr.mxu0 0.0
      %725 = vmatpush1.msra.mxu0 0.0
      %726 = vmatprep.subr.mxu0 0.0
      %727 = vmatpush1.msra.mxu0 0.0
      %728 = vmatprep.subr.mxu0 0.0
      %729 = vmatpush1.msra.mxu0 0.0
      %730 = vmatprep.subr.mxu0 0.0
      %731 = vmatpush1.msra.mxu0 0.0
      %732 = vmatprep.subr.mxu0 0.0
      %733 = vmatpush1.msra.mxu0 0.0
      %734 = vmatprep.subr.mxu0 0.0
      %735 = vmatpush1.msra.mxu0 0.0
      %736 = vmatprep.subr.mxu0 0.0
      %737 = vmatpush1.msra.mxu0 0.0
      %738 = vmatprep.subr.mxu0 0.0
      %739 = vmatpush1.msra.mxu0 0.0
      %740 = vmatprep.subr.mxu0 0.0
      %741 = vmatpush1.msra.mxu0 0.0
      %742 = vmatprep.subr.mxu0 0.0
      %743 = vmatpush1.msra.mxu0 0.0
      %744 = vmatprep.subr.mxu0 0.0
      %745 = vmatpush1.msra.mxu0 0.0
      %746 = vmatprep.subr.mxu0 0.0
      %747 = vmatpush1.msra.mxu0 0.0
      %748 = vmatprep.subr.mxu0 0.0
      %749 = vmatpush1.msra.mxu0 0.0
      %750 = vmatprep.subr.mxu0 0.0
      %751 = vmatpush1.msra.mxu0 0.0
      %752 = vmatprep.subr.mxu0 0.0
      %753 = vmatpush1.msra.mxu0 0.0
      %754 = vmatprep.subr.mxu0 0.0
      %755 = vmatpush1.msra.mxu0 0.0
      %756 = vmatprep.subr.mxu0 0.0
      %757 = vmatpush1.msra.mxu0 0.0
      %758 = vmatprep.subr.mxu0 0.0
      %759 = vmatpush1.msra.mxu0 0.0
      %760 = vmatprep.subr.mxu0 0.0
      %761 = vmatpush1.msra.mxu0 0.0
      %762 = vmatprep.subr.mxu0 0.0
      %763 = vmatpush1.msra.mxu0 0.0
      %764 = vmatprep.subr.mxu0 0.0
      %765 = vmatpush1.msra.mxu0 0.0
      %766 = vmatprep.subr.mxu0 0.0
      %767 = vmatpush1.msra.mxu0 0.0
      %768 = vmatprep.subr.mxu0 0.0
      %769 = vmatpush1.msra.mxu0 0.0
      %770 = vmatprep.subr.mxu0 0.0
      %771 = vmatpush1.msra.mxu0 0.0
      %772 = vmatprep.mubr.f32.mxu0 0.0
      %773 = vmatmul.mubr.f32.gmra.mrb[0].mxu0 %v703
      %v774 = vpop.f32.mrb[0].mxu0
      %v775 = vadd.f32 %v694, %v774
      %v776 = vpop.f32.mrb[0].mxu0
      %777 = vmatprep.mubr.f32.mxu0 0.0
      %778 = vmatmul.mubr.f32.gmra.mrb[0].mxu0 %v706
      %v779 = vpop.f32.mrb[0].mxu0
      %v780 = vadd.f32 %v699, %v779
      %v781 = vpop.f32.mrb[0].mxu0
      %782 = vdwg.mxu0
      %v783 = vld [vmem:[%s5] sm:$0x1]
      %v785 = vlaneseq
      %v786 = vshrl.u32 %v785, 7
      %v787 = vsub.s32 0, %v786
      %v788 = vrot.slane %v783, %v787
      %v790 = vadd.f32 %v775, %v788
      %v791 = vadd.f32 %v780, %v788
      %792 = vst [vmem:[%s251] sm:$0xff] %v790
      %793 = vst [vmem:[%s251 + $0x8] sm:$0xff] %v791
      %p794 = scmp.lt.s32.totalorder %s17, 1
      %s795 = scalar_select %p794, %s17, 1
      %s796 = smul.addr %s795, 2
      %s797 = smul.addr %s796, 8
      %s798 = scalar_lea.vmem %s6, %s797
      // Predicated region
      $region45: #{plat_contrast_forward.1} parent=43 // pred_check
        %p799 = pneg %p166
      $region46: #{plat_contrast_forward.1} parent=43 // pred_check_branch
        %801 = sbr.rel (%p799) target = $region48
      $region47: #{plat_contrast_forward.1} parent=43 // pred_region
        _
      $region48: #{plat_contrast_forward.1} parent=43 // pred_fallthru
        _
    $region44: #{plat_contrast_forward.1} parent=5 // pred_fallthru
      _
    %p802 = scmp.le.s32.totalorder 2, %s12
    // Predicated region
    $region49: #{plat_contrast_forward.1} parent=5 // pred_check
      %p803 = pneg %p802
    $region50: #{plat_contrast_forward.1} parent=5 // pred_check_branch
      %805 = sbr.rel (%p803) target = $region52
    $region51: #{plat_contrast_forward.1} parent=5 // pred_region
      %s806 = ssub.s32 %s12, 2
      // Predicated region
      $region53: #{plat_contrast_forward.1} parent=51 // pred_check
        %p807 = pneg %p172
      $region54: #{plat_contrast_forward.1} parent=51 // pred_check_branch
        %809 = sbr.rel (%p807) target = $region56
      $region55: #{plat_contrast_forward.1} parent=51 // pred_region
        %p810 = scmp.lt.s32.totalorder %s18, 1
        %s811 = scalar_select %p810, %s18, 1
        %s812 = smul.addr %s811, 2
        %s813 = smul.addr %s812, 8
        %s814 = scalar_lea.vmem %s6, %s813
      $region56: #{plat_contrast_forward.1} parent=51 // pred_fallthru
        _
    $region52: #{plat_contrast_forward.1} parent=5 // pred_fallthru
      _
  $region6: #{plat_contrast_forward.1} parent=0 // loop_footer
    %s16 = sadd.s32 1, %s12
  $region7: #{plat_contrast_forward.1} parent=0 // loop_footer_branch
    %11 = sbr.rel target = $region3
  $region8: #{plat_contrast_forward.1} parent=0 // loop_exit
    _

</llo_original>
